<compile_context>
chip_gen: v6e
topology: v6e:2x2x1
jax: 0.10.0
libtpu: 0.0.40
codegen_flags: <defaults>
</compile_context>

<pallas_src>
import functools

import jax
import jax.numpy as jnp
from jax.experimental import pallas as pl
from jax.experimental.pallas import tpu as pltpu


_NEG_INF = -1e30  # large-but-finite: avoids (-inf) - (-inf) NaNs in padded rows


def _round_up(x, m):
    return ((x + m - 1) // m) * m


def _vmem_budget_bytes():
    """~75% of physical per-core VMEM (headroom for Mosaic internal scratch)."""
    cap = 64 * 1024 * 1024
    try:
        info = pltpu.get_tpu_info()
        cap = int(getattr(info, "vmem_capacity_bytes", cap) or cap)
    except Exception:
        pass
    return (cap * 3) // 4


# --------------------------------------------------------------------------
# Kernel 1: fused QKV projection (Q pre-scaled, K stored transposed)
# --------------------------------------------------------------------------
def _qkv_proj_kernel(x_ref, wqkv_ref, bqkv_ref, q_ref, kt_ref, v_ref, *, embed_dim):
    E = embed_dim
    x = x_ref[0]                                                   # (tr, E)
    qkv = jnp.dot(x, wqkv_ref[...], preferred_element_type=jnp.float32)
    qkv = qkv + bqkv_ref[...]                                      # (tr, 3E) f32
    q_ref[0] = qkv[:, :E].astype(q_ref.dtype)
    # One transpose per row tile (instead of H * n_query_tiles XLU transposes
    # inside the attention kernel).
    kt_ref[0] = qkv[:, E:2 * E].T.astype(kt_ref.dtype)             # (E, tr)
    v_ref[0] = qkv[:, 2 * E:].astype(v_ref.dtype)


# --------------------------------------------------------------------------
# Kernel 2: attention + fused output projection
# --------------------------------------------------------------------------
def _attn_body(q_ref, kt_ref, v_ref, mask_ref, wo_ref, bo_ref, o_ref, ctx_ref, *,
               num_heads, head_dim, seq_valid, seq_pad, need_pad_mask):
    tq = q_ref.shape[1]

    for h in range(num_heads):
        c0 = h * head_dim
        c1 = c0 + head_dim
        q_h = q_ref[0, :, c0:c1]                      # (tq, Dh), scale pre-folded
        kt_h = kt_ref[0, c0:c1, :]                    # (Dh, Sp): native (M,K)x(K,N) feed
        s = jnp.dot(q_h, kt_h, preferred_element_type=jnp.float32)   # (tq, Sp) f32

        if mask_ref is not None:
            # Re-read from VMEM per head so the (tq, Sp) mask never has to sit
            # live in vregs across the whole head loop.
            s = s + mask_ref[0, 0]
        elif need_pad_mask:
            col = jax.lax.broadcasted_iota(jnp.int32, (tq, seq_pad), 1)
            s = jnp.where(col < seq_valid, s, _NEG_INF)

        m = jnp.max(s, axis=-1, keepdims=True)
        p = jnp.exp(s - m)
        denom = jnp.sum(p, axis=-1, keepdims=True)
        inv = pl.reciprocal(denom, approx=True)       # EUP slot
        inv = inv * (2.0 - denom * inv)               # one Newton step -> ~f32 accuracy

        v_h = v_ref[0, :, c0:c1]                      # (Sp, Dh)
        ctx_h = jnp.dot(p.astype(v_h.dtype), v_h, preferred_element_type=jnp.float32)
        # Immediate slab write: bounds live ranges (no ctx_parts / concatenate).
        ctx_ref[:, c0:c1] = ctx_h * inv

    out = jnp.dot(ctx_ref[...].astype(wo_ref.dtype), wo_ref[...],
                  preferred_element_type=jnp.float32) + bo_ref[...]
    o_ref[0] = out.astype(o_ref.dtype)


def _attn_kernel_mask(q_ref, kt_ref, v_ref, mask_ref, wo_ref, bo_ref,
                      o_ref, ctx_ref, **kw):
    _attn_body(q_ref, kt_ref, v_ref, mask_ref, wo_ref, bo_ref, o_ref, ctx_ref, **kw)


def _attn_kernel_nomask(q_ref, kt_ref, v_ref, wo_ref, bo_ref,
                        o_ref, ctx_ref, **kw):
    _attn_body(q_ref, kt_ref, v_ref, None, wo_ref, bo_ref, o_ref, ctx_ref, **kw)


# --------------------------------------------------------------------------
# Wrapper
# --------------------------------------------------------------------------
def parallel_clip_attention(hidden_states,
                            wq, bq, wk, bk, wv, bv, wo, bo,
                            *, num_heads,
                            attention_mask=None,
                            causal_attention_mask=None,
                            compute_dtype=None):
    B, S, E = hidden_states.shape
    assert E % num_heads == 0
    head_dim = E // num_heads
    scale = head_dim ** (-0.5)
    cdt = jnp.dtype(compute_dtype) if compute_dtype is not None else hidden_states.dtype
    item = jnp.dtype(cdt).itemsize
    out_dtype = hidden_states.dtype

    # ---- Pad sequence to a lane-friendly multiple of 128 ---------------------
    Sp = _round_up(S, 128)
    tq = 256 if Sp % 256 == 0 else 128            # query tile (MXU M dim)
    tr = 256 if Sp % 256 == 0 else 128            # projection row tile
    nq, nr = Sp // tq, Sp // tr

    # ---- Fused, pre-transposed weights; softmax scale folded into Wq/bq ------
    w_qkv = jnp.concatenate([wq * scale, wk, wv], axis=0).T.astype(cdt)   # (E, 3E)
    b_qkv = jnp.concatenate([bq * scale, bk, bv]).reshape(1, 3 * E).astype(jnp.float32)
    w_o = wo.T.astype(cdt)                                                # (E, E)
    b_o = bo.reshape(1, E).astype(jnp.float32)

    # ---- Optional additive mask: keep natural batch dim, pad key dim ---------
    if attention_mask is not None and causal_attention_mask is not None:
        attn_mask = attention_mask + causal_attention_mask
    elif causal_attention_mask is not None:
        attn_mask = causal_attention_mask
    else:
        attn_mask = attention_mask
    has_mask = attn_mask is not None
    mask_b = 1
    if has_mask:
        attn_mask = jnp.asarray(attn_mask, dtype=jnp.float32)
        if attn_mask.ndim == 3:
            attn_mask = attn_mask[:, None]                 # (Bm, 1, S, S)
        assert attn_mask.shape[-2:] == (S, S)
        if Sp != S:
            pad = Sp - S
            attn_mask = jnp.pad(attn_mask, ((0, 0), (0, 0), (0, 0), (0, pad)),
                                constant_values=_NEG_INF)   # padded keys masked out
            attn_mask = jnp.pad(attn_mask, ((0, 0), (0, 0), (0, pad), (0, 0)),
                                constant_values=0.0)        # padded queries: rows dropped
        mask_b = attn_mask.shape[0]
    need_pad_mask = (not has_mask) and (Sp != S)

    x = hidden_states.astype(cdt)
    if Sp != S:
        x = jnp.pad(x, ((0, 0), (0, Sp - S), (0, 0)))

    budget = _vmem_budget_bytes()

    # ======================= Kernel 1: QKV projection =========================
    proj_cost = pl.CostEstimate(
        flops=int(2 * B * Sp * E * 3 * E),
        transcendentals=0,
        bytes_accessed=int(4 * B * Sp * E * item + 3 * E * E * item + 3 * E * 4))
    proj_vmem = (2 * tr * E * item                      # x tile (double buffered)
                 + 2 * (E * 3 * E * item + 3 * E * 4)   # weights + bias
                 + 2 * 3 * tr * E * item                # q / kT / v output tiles
                 + 4 * tr * 3 * E * 4)                  # f32 intermediate headroom
    proj_limit = int(min(max(proj_vmem * 3 // 2, 32 * 1024 * 1024), budget))

    q_all, kt_all, v_all = pl.pallas_call(
        functools.partial(_qkv_proj_kernel, embed_dim=E),
        out_shape=(jax.ShapeDtypeStruct((B, Sp, E), cdt),
                   jax.ShapeDtypeStruct((B, E, Sp), cdt),
                   jax.ShapeDtypeStruct((B, Sp, E), cdt)),
        grid=(B, nr),
        in_specs=[pl.BlockSpec((1, tr, E), lambda b, r: (b, r, 0)),
                  pl.BlockSpec((E, 3 * E), lambda b, r: (0, 0)),
                  pl.BlockSpec((1, 3 * E), lambda b, r: (0, 0))],
        out_specs=(pl.BlockSpec((1, tr, E), lambda b, r: (b, r, 0)),
                   pl.BlockSpec((1, E, tr), lambda b, r: (b, 0, r)),
                   pl.BlockSpec((1, tr, E), lambda b, r: (b, r, 0))),
        compiler_params=pltpu.CompilerParams(
            dimension_semantics=("parallel", "parallel"),
            vmem_limit_bytes=proj_limit),
        cost_estimate=proj_cost,
    )(x, w_qkv, b_qkv)

    # ================= Kernel 2: attention + output projection ================
    kernel = functools.partial(
        _attn_kernel_mask if has_mask else _attn_kernel_nomask,
        num_heads=num_heads, head_dim=head_dim,
        seq_valid=S, seq_pad=Sp, need_pad_mask=need_pad_mask)

    in_specs = [pl.BlockSpec((1, tq, E), lambda b, qi: (b, qi, 0)),   # Q tile
                pl.BlockSpec((1, E, Sp), lambda b, qi: (b, 0, 0)),    # K^T (resident / batch)
                pl.BlockSpec((1, Sp, E), lambda b, qi: (b, 0, 0))]    # V   (resident / batch)
    args = [q_all, kt_all, v_all]
    if has_mask:
        if mask_b == 1:
            midx = lambda b, qi: (0, 0, qi, 0)
        else:
            midx = lambda b, qi: (b, 0, qi, 0)
        in_specs.append(pl.BlockSpec((1, 1, tq, Sp), midx))
        args.append(attn_mask)
    in_specs += [pl.BlockSpec((E, E), lambda b, qi: (0, 0)),
                 pl.BlockSpec((1, E), lambda b, qi: (0, 0))]
    args += [w_o, b_o]

    attn_cost = pl.CostEstimate(
        flops=int(B * (4 * Sp * Sp * E + 2 * Sp * E * E)),
        transcendentals=int(B * num_heads * Sp * Sp),
        bytes_accessed=int(4 * B * Sp * E * item + E * E * item
                           + (mask_b * Sp * Sp * 4 if has_mask else 0)))
    attn_vmem = (2 * tq * E * item                      # q tile
                 + 2 * 2 * Sp * E * item                # kT + v
                 + 2 * (E * E * item + E * 4)           # Wo + bias
                 + 2 * tq * E * item                    # out tile
                 + tq * E * 4                           # ctx slab scratch
                 + (2 * tq * Sp * 4 if has_mask else 0)
                 + 4 * tq * Sp * 4)                     # score/prob headroom
    attn_limit = int(min(max(attn_vmem * 3 // 2, 32 * 1024 * 1024), budget))

    out_pad = pl.pallas_call(
        kernel,
        out_shape=jax.ShapeDtypeStruct((B, Sp, E), out_dtype),
        grid=(B, nq),
        in_specs=in_specs,
        out_specs=pl.BlockSpec((1, tq, E), lambda b, qi: (b, qi, 0)),
        scratch_shapes=[pltpu.VMEM((tq, E), jnp.float32)],
        compiler_params=pltpu.CompilerParams(
            dimension_semantics=("parallel", "parallel"),
            vmem_limit_bytes=attn_limit),
        cost_estimate=attn_cost,
    )(*args)

    return out_pad[:, :S, :] if Sp != S else out_pad


# --------------------------------------------------------------------------
# Pure-JAX reference + self-test
# --------------------------------------------------------------------------
def _reference(hidden_states, wq, bq, wk, bk, wv, bv, wo, bo,
               *, num_heads, attn_mask=None):
    B, S, E = hidden_states.shape
    head_dim = E // num_heads
    scale = head_dim ** (-0.5)
    x = hidden_states.astype(jnp.float32)
    q = (x @ wq.T + bq).reshape(B, S, num_heads, head_dim).transpose(0, 2, 1, 3)
    k = (x @ wk.T + bk).reshape(B, S, num_heads, head_dim).transpose(0, 2, 1, 3)
    v = (x @ wv.T + bv).reshape(B, S, num_heads, head_dim).transpose(0, 2, 1, 3)
    scores = jnp.einsum('bhqd,bhkd->bhqk', q, k) * scale
    if attn_mask is not None:
        scores = scores + attn_mask
    p = jax.nn.softmax(scores, axis=-1)
    ctx = jnp.einsum('bhqk,bhkd->bhqd', p, v)
    ctx = ctx.transpose(0, 2, 1, 3).reshape(B, S, E)
    return (ctx @ wo.T + bo).astype(hidden_states.dtype)


if __name__ == "__main__":
    B, S, E, H = 2, 8, 32, 4   # batch, seq, hidden_size, num_attention_heads

    key = jax.random.PRNGKey(0)
    ks = jax.random.split(key, 10)
    x = jax.random.normal(ks[0], (B, S, E), dtype=jnp.float32)
    wq = jax.random.normal(ks[1], (E, E), dtype=jnp.float32) * 0.05
    wk = jax.random.normal(ks[2], (E, E), dtype=jnp.float32) * 0.05
    wv = jax.random.normal(ks[3], (E, E), dtype=jnp.float32) * 0.05
    wo = jax.random.normal(ks[4], (E, E), dtype=jnp.float32) * 0.05
    bq = jax.random.normal(ks[5], (E,), dtype=jnp.float32) * 0.01
    bk = jax.random.normal(ks[6], (E,), dtype=jnp.float32) * 0.01
    bv = jax.random.normal(ks[7], (E,), dtype=jnp.float32) * 0.01
    bo = jax.random.normal(ks[8], (E,), dtype=jnp.float32) * 0.01

    # Causal additive float mask (B, 1, S, S), like CLIP's causal_attention_mask.
    causal = jnp.where(
        jnp.arange(S)[:, None] >= jnp.arange(S)[None, :], 0.0, -1e9
    ).astype(jnp.float32)
    causal_attention_mask = jnp.broadcast_to(causal, (B, 1, S, S))

    # Path 1: with a causal attention mask.
    out_masked = parallel_clip_attention(
        x, wq, bq, wk, bk, wv, bv, wo, bo,
        num_heads=H, causal_attention_mask=causal_attention_mask)
    out_masked = jax.block_until_ready(out_masked)
    ref_masked = _reference(x, wq, bq, wk, bk, wv, bv, wo, bo,
                            num_heads=H, attn_mask=causal_attention_mask)
    assert out_masked.shape == (B, S, E)
    assert jnp.allclose(out_masked, ref_masked, atol=5e-4, rtol=5e-4), \
        "masked path mismatch vs reference"

    # Path 2: no user mask (padded keys handled by in-kernel iota mask).
    out_plain = parallel_clip_attention(
        x, wq, bq, wk, bk, wv, bv, wo, bo, num_heads=H)
    out_plain = jax.block_until_ready(out_plain)
    ref_plain = _reference(x, wq, bq, wk, bk, wv, bv, wo, bo,
                           num_heads=H, attn_mask=None)
    assert jnp.allclose(out_plain, ref_plain, atol=5e-4, rtol=5e-4), \
        "no-mask path mismatch vs reference"

    print("KERNEL_OK")
</pallas_src>

<mosaic_0001>
module attributes {stable_mosaic.version = 11 : i64} {
  func.func @_qkv_proj_kernel(%arg0: i32, %arg1: i32, %arg2: memref<1x128x32xf32, #tpu.memory_space<vmem>>, %arg3: memref<32x96xf32, #tpu.memory_space<vmem>>, %arg4: memref<1x96xf32, #tpu.memory_space<vmem>>, %arg5: memref<1x128x32xf32, #tpu.memory_space<vmem>>, %arg6: memref<1x32x128xf32, #tpu.memory_space<vmem>>, %arg7: memref<1x128x32xf32, #tpu.memory_space<vmem>>) attributes {dimension_semantics = [#tpu.dimension_semantics<parallel>, #tpu.dimension_semantics<parallel>], iteration_bounds = array<i64: 2, 1>, scalar_prefetch = 0 : i64, scratch_operands = 0 : i64, tpu.core_type = #tpu.core_type<tc>, window_params = [{transform_indices = @transform_0, window_bounds = array<i64: 1, 128, 32>}, {pipeline_mode = #tpu.pipeline_mode<synchronous>, transform_indices = @transform_1, window_bounds = array<i64: 32, 96>}, {pipeline_mode = #tpu.pipeline_mode<synchronous>, transform_indices = @transform_2, window_bounds = array<i64: 1, 96>}, {transform_indices = @transform_3, window_bounds = array<i64: 1, 128, 32>}, {transform_indices = @transform_4, window_bounds = array<i64: 1, 32, 128>}, {transform_indices = @transform_5, window_bounds = array<i64: 1, 128, 32>}]} {
    %c0 = arith.constant 0 : index
    %c0_0 = arith.constant 0 : index
    %c0_1 = arith.constant 0 : index
    %0 = vector.load %arg2[%c0, %c0_0, %c0_1] : memref<1x128x32xf32, #tpu.memory_space<vmem>>, vector<1x128x32xf32>
    %1 = vector.shape_cast %0 : vector<1x128x32xf32> to vector<128x32xf32>
    %c0_2 = arith.constant 0 : index
    %c0_3 = arith.constant 0 : index
    %2 = vector.load %arg3[%c0_2, %c0_3] : memref<32x96xf32, #tpu.memory_space<vmem>>, vector<32x96xf32>
    %cst = arith.constant dense<0.000000e+00> : vector<128x96xf32>
    %3 = tpu.matmul %1, %2, %cst {dimension_numbers = #tpu.dot_dimension_numbers<[1], [0], [0], [1], [0, 0, 1, 1], [], []>} : vector<128x32xf32>, vector<32x96xf32>, vector<128x96xf32> -> vector<128x96xf32>
    %c0_4 = arith.constant 0 : index
    %c0_5 = arith.constant 0 : index
    %4 = vector.load %arg4[%c0_4, %c0_5] : memref<1x96xf32, #tpu.memory_space<vmem>>, vector<1x96xf32>
    %5 = vector.broadcast %4 : vector<1x96xf32> to vector<128x96xf32>
    %6 = arith.addf %3, %5 : vector<128x96xf32>
    %7 = vector.extract_strided_slice %6 {offsets = [0, 0], sizes = [128, 32], strides = [1, 1]} : vector<128x96xf32> to vector<128x32xf32>
    %c0_6 = arith.constant 0 : index
    %c0_7 = arith.constant 0 : index
    %c0_8 = arith.constant 0 : index
    %8 = vector.load %arg5[%c0_6, %c0_7, %c0_8] : memref<1x128x32xf32, #tpu.memory_space<vmem>>, vector<1x128x32xf32>
    %9 = vector.shape_cast %8 : vector<1x128x32xf32> to vector<128x32xf32>
    %10 = vector.shape_cast %7 : vector<128x32xf32> to vector<1x128x32xf32>
    tpu.vector_store %arg5[%c0_6, %c0_7, %c0_8], %10 {strides = array<i32>} : memref<1x128x32xf32, #tpu.memory_space<vmem>>, vector<1x128x32xf32>,
    %11 = vector.extract_strided_slice %6 {offsets = [0, 32], sizes = [128, 32], strides = [1, 1]} : vector<128x96xf32> to vector<128x32xf32>
    %12 = tpu.transpose %11, [1, 0] : vector<128x32xf32> -> vector<32x128xf32>
    %c0_9 = arith.constant 0 : index
    %c0_10 = arith.constant 0 : index
    %c0_11 = arith.constant 0 : index
    %13 = vector.load %arg6[%c0_9, %c0_10, %c0_11] : memref<1x32x128xf32, #tpu.memory_space<vmem>>, vector<1x32x128xf32>
    %14 = vector.shape_cast %13 : vector<1x32x128xf32> to vector<32x128xf32>
    %15 = vector.shape_cast %12 : vector<32x128xf32> to vector<1x32x128xf32>
    tpu.vector_store %arg6[%c0_9, %c0_10, %c0_11], %15 {strides = array<i32>} : memref<1x32x128xf32, #tpu.memory_space<vmem>>, vector<1x32x128xf32>,
    %16 = vector.extract_strided_slice %6 {offsets = [0, 64], sizes = [128, 32], strides = [1, 1]} : vector<128x96xf32> to vector<128x32xf32>
    %c0_12 = arith.constant 0 : index
    %c0_13 = arith.constant 0 : index
    %c0_14 = arith.constant 0 : index
    %17 = vector.load %arg7[%c0_12, %c0_13, %c0_14] : memref<1x128x32xf32, #tpu.memory_space<vmem>>, vector<1x128x32xf32>
    %18 = vector.shape_cast %17 : vector<1x128x32xf32> to vector<128x32xf32>
    %19 = vector.shape_cast %16 : vector<128x32xf32> to vector<1x128x32xf32>
    tpu.vector_store %arg7[%c0_12, %c0_13, %c0_14], %19 {strides = array<i32>} : memref<1x128x32xf32, #tpu.memory_space<vmem>>, vector<1x128x32xf32>,
    return
  }
  func.func @transform_0(%arg0: i32, %arg1: i32) -> (i32, i32, i32) {
    %c0_i32 = arith.constant 0 : i32
    %c0_i32_0 = arith.constant 0 : i32
    return %arg0, %arg1, %c0_i32 : i32, i32, i32
  }
  func.func @transform_1(%arg0: i32, %arg1: i32) -> (i32, i32) {
    %c0_i32 = arith.constant 0 : i32
    %c0_i32_0 = arith.constant 0 : i32
    %c0_i32_1 = arith.constant 0 : i32
    return %c0_i32, %c0_i32_0 : i32, i32
  }
  func.func @transform_2(%arg0: i32, %arg1: i32) -> (i32, i32) {
    %c0_i32 = arith.constant 0 : i32
    %c0_i32_0 = arith.constant 0 : i32
    %c0_i32_1 = arith.constant 0 : i32
    return %c0_i32, %c0_i32_0 : i32, i32
  }
  func.func @transform_3(%arg0: i32, %arg1: i32) -> (i32, i32, i32) {
    %c0_i32 = arith.constant 0 : i32
    %c0_i32_0 = arith.constant 0 : i32
    return %arg0, %arg1, %c0_i32 : i32, i32, i32
  }
  func.func @transform_4(%arg0: i32, %arg1: i32) -> (i32, i32, i32) {
    %c0_i32 = arith.constant 0 : i32
    %c0_i32_0 = arith.constant 0 : i32
    return %arg0, %c0_i32, %arg1 : i32, i32, i32
  }
  func.func @transform_5(%arg0: i32, %arg1: i32) -> (i32, i32, i32) {
    %c0_i32 = arith.constant 0 : i32
    %c0_i32_0 = arith.constant 0 : i32
    return %arg0, %arg1, %c0_i32 : i32, i32, i32
  }
}

</mosaic_0001>

<llo_original>
// kernel: tpu_custom_call.1
$region0: #{tpu_custom_call.1}
  #allocation0 [shape = 'u32[]', space=smem, size = 0x4, offset = 0x4, fixed_abs, tag = 'smem constant byte address 0x4 - core index']
  #allocation1 [shape = 'u32[144,128]{1,0:T(1,128)}', space=vmem, size = 0x12000, scoped, tag = 'internal scratch']
  %s0 = inlined_call_operand.vmem [shape: f32[2,128,32], index: 0, kind: input, shape index: {}]
  %s1 = inlined_call_operand.vmem [shape: f32[32,96], index: 1, kind: input, shape index: {}]
  %s2 = inlined_call_operand.vmem [shape: f32[1,96], index: 2, kind: input, shape index: {}]
  %s3 = inlined_call_operand.vmem [shape: f32[2,128,32], index: 3, kind: output, shape index: {0}]
  %s4 = inlined_call_operand.hbm [shape: f32[2,32,128], index: 4, kind: output, shape index: {1}]
  %s5 = inlined_call_operand.vmem [shape: f32[2,128,32], index: 5, kind: output, shape index: {2}]
  %6 = xla_tuple %s3, %s4, %s5
  %s7 = sld [smem:[#allocation0]]
  $region61: #{tpu_custom_call.1} parent=0
    _
  %s9 = ssub.s32 1, %s7
  %s10 = scalar_select 0, %s9, %s7
  $region1: #{tpu_custom_call.1} parent=0
    #allocation2 [shape = 'u8[32768]{0}', space=vmem, size = 0x8000, scoped, tag = 'output window, operand 1']
    #allocation3 [shape = 's32[2]{0}', space=sflag, size = 0x8, scoped, tag = 'scoped memory for tpu_custom_call.1']
    %11 = vsyncpa [#allocation3], 0
    %s12 = scalar_lea.sflag [#allocation3], 1
    %13 = vsyncpa %s12, 0
    loop: start=0, step=1, limit=4
    $region2: #{tpu_custom_call.1} parent=1 // loop_pre_header
      _
    $region3: #{tpu_custom_call.1} parent=1 // loop_header
      %s15 = sphi 0, %s19
      %p16 = scmp.ge.s32.totalorder %s15, 4
      %s22 = sphi 0, %s34
      %s23 = sphi 0, %s30
      %s24 = sphi 0, %s22
      %s25 = sphi 0, %s23
      %s26 = sphi 0, %s24
      %s27 = sphi 0, %s25
      %s39 = sphi 0, %s41
      %s42 = sphi 0, %s39
      %s43 = sphi 0, %s42
      %s59 = sphi 0, %s43
      %s63 = sphi 0, %s63
      %s65 = sphi 0, %s63
      %s66 = sphi 0, %s65
      %s80 = sphi 0, %s66
      %s84 = sphi 0, %s84
      %s86 = sphi 0, %s84
      %s87 = sphi 0, %s86
      %s101 = sphi 0, %s87
      %s109 = sphi 0, %s111
      %s112 = sphi 0, %s109
      %s113 = sphi 0, %s112
      %s129 = sphi 0, %s113
      %s137 = sphi 0, %s139
      %s140 = sphi 0, %s137
      %s141 = sphi 0, %s140
      %s157 = sphi 0, %s141
      %s165 = sphi 0, %s167
      %s168 = sphi 0, %s165
      %s169 = sphi 0, %s168
      %s185 = sphi 0, %s169
    $region4: #{tpu_custom_call.1} parent=1 // loop_header_branch
      %18 = sbr.rel (%p16) target = $region8
    $region5: #{tpu_custom_call.1} parent=1 // loop_body
      %s20 = ssub.s32 %s15, 1
      %s21 = ssub.s32 %s15, 2
      %s28 = sadd.s32 1, %s23
      %p29 = scmp.ge.s32.totalorder %s28, 1
      %s30 = scalar_select %p29, 0, %s28
      %s31 = sadd.s32 1, %s22
      %s32 = scalar_select %p29, %s31, %s22
      %p33 = scmp.ge.s32.totalorder %s32, 2
      %s34 = scalar_select %p33, 0, %s32
      %s35 = ssub.s32 %s22, %s34
      %s36 = ssub.s32 %s23, %s30
      %s37 = sor.u32 %s35, %s36
      %p38 = scmp.eq.s32.totalorder %s37, 0
      %s40 = sadd.s32 %s39, 1
      %s41 = scalar_select %p38, %s39, %s40
      %p44 = pneg %p38
      %p45 = scmp.eq.s32.totalorder %s15, 1
      %p46 = por %p44, %p45
      %p47 = scmp.ne.s32.totalorder %s39, %s42
      %p48 = scmp.eq.s32.totalorder %s15, 0
      %p49 = por %p47, %p48
      %p50 = scmp.ne.s32.totalorder %s39, %s42
      %p51 = scmp.eq.s32.totalorder %s20, 1
      %p52 = por %p50, %p51
      %p53 = scmp.ne.s32.totalorder %s42, %s43
      %p54 = scmp.eq.s32.totalorder %s20, 0
      %p55 = por %p53, %p54
      %p56 = scmp.ne.s32.totalorder %s42, %s43
      %p57 = scmp.eq.s32.totalorder %s21, 1
      %p58 = por %p56, %p57
      %p60 = scmp.ne.s32.totalorder %s43, %s59
      %p61 = scmp.eq.s32.totalorder %s21, 0
      %p62 = por %p60, %p61
      %s64 = sadd.s32 %s63, 1
      %p67 = scmp.eq.s32.totalorder %s15, 1
      %p68 = scmp.ne.s32.totalorder %s63, %s65
      %p69 = scmp.eq.s32.totalorder %s15, 0
      %p70 = por %p68, %p69
      %p71 = scmp.ne.s32.totalorder %s63, %s65
      %p72 = scmp.eq.s32.totalorder %s20, 1
      %p73 = por %p71, %p72
      %p74 = scmp.ne.s32.totalorder %s65, %s66
      %p75 = scmp.eq.s32.totalorder %s20, 0
      %p76 = por %p74, %p75
      %p77 = scmp.ne.s32.totalorder %s65, %s66
      %p78 = scmp.eq.s32.totalorder %s21, 1
      %p79 = por %p77, %p78
      %p81 = scmp.ne.s32.totalorder %s66, %s80
      %p82 = scmp.eq.s32.totalorder %s21, 0
      %p83 = por %p81, %p82
      %s85 = sadd.s32 %s84, 1
      %p88 = scmp.eq.s32.totalorder %s15, 1
      %p89 = scmp.ne.s32.totalorder %s84, %s86
      %p90 = scmp.eq.s32.totalorder %s15, 0
      %p91 = por %p89, %p90
      %p92 = scmp.ne.s32.totalorder %s84, %s86
      %p93 = scmp.eq.s32.totalorder %s20, 1
      %p94 = por %p92, %p93
      %p95 = scmp.ne.s32.totalorder %s86, %s87
      %p96 = scmp.eq.s32.totalorder %s20, 0
      %p97 = por %p95, %p96
      %p98 = scmp.ne.s32.totalorder %s86, %s87
      %p99 = scmp.eq.s32.totalorder %s21, 1
      %p100 = por %p98, %p99
      %p102 = scmp.ne.s32.totalorder %s87, %s101
      %p103 = scmp.eq.s32.totalorder %s21, 0
      %p104 = por %p102, %p103
      %s105 = ssub.s32 %s22, %s34
      %s106 = ssub.s32 %s23, %s30
      %s107 = sor.u32 %s105, %s106
      %p108 = scmp.eq.s32.totalorder %s107, 0
      %s110 = sadd.s32 %s109, 1
      %s111 = scalar_select %p108, %s109, %s110
      %p114 = pneg %p108
      %p115 = scmp.eq.s32.totalorder %s15, 1
      %p116 = por %p114, %p115
      %p117 = scmp.ne.s32.totalorder %s109, %s112
      %p118 = scmp.eq.s32.totalorder %s15, 0
      %p119 = por %p117, %p118
      %p120 = scmp.ne.s32.totalorder %s109, %s112
      %p121 = scmp.eq.s32.totalorder %s20, 1
      %p122 = por %p120, %p121
      %p123 = scmp.ne.s32.totalorder %s112, %s113
      %p124 = scmp.eq.s32.totalorder %s20, 0
      %p125 = por %p123, %p124
      %p126 = scmp.ne.s32.totalorder %s112, %s113
      %p127 = scmp.eq.s32.totalorder %s21, 1
      %p128 = por %p126, %p127
      %p130 = scmp.ne.s32.totalorder %s113, %s129
      %p131 = scmp.eq.s32.totalorder %s21, 0
      %p132 = por %p130, %p131
      %s133 = ssub.s32 %s22, %s34
      %s134 = ssub.s32 %s23, %s30
      %s135 = sor.u32 %s133, %s134
      %p136 = scmp.eq.s32.totalorder %s135, 0
      %s138 = sadd.s32 %s137, 1
      %s139 = scalar_select %p136, %s137, %s138
      %p142 = pneg %p136
      %p143 = scmp.eq.s32.totalorder %s15, 1
      %p144 = por %p142, %p143
      %p145 = scmp.ne.s32.totalorder %s137, %s140
      %p146 = scmp.eq.s32.totalorder %s15, 0
      %p147 = por %p145, %p146
      %p148 = scmp.ne.s32.totalorder %s137, %s140
      %p149 = scmp.eq.s32.totalorder %s20, 1
      %p150 = por %p148, %p149
      %p151 = scmp.ne.s32.totalorder %s140, %s141
      %p152 = scmp.eq.s32.totalorder %s20, 0
      %p153 = por %p151, %p152
      %p154 = scmp.ne.s32.totalorder %s140, %s141
      %p155 = scmp.eq.s32.totalorder %s21, 1
      %p156 = por %p154, %p155
      %p158 = scmp.ne.s32.totalorder %s141, %s157
      %p159 = scmp.eq.s32.totalorder %s21, 0
      %p160 = por %p158, %p159
      %s161 = ssub.s32 %s22, %s34
      %s162 = ssub.s32 %s23, %s30
      %s163 = sor.u32 %s161, %s162
      %p164 = scmp.eq.s32.totalorder %s163, 0
      %s166 = sadd.s32 %s165, 1
      %s167 = scalar_select %p164, %s165, %s166
      %p170 = pneg %p164
      %p171 = scmp.eq.s32.totalorder %s15, 1
      %p172 = por %p170, %p171
      %p173 = scmp.ne.s32.totalorder %s165, %s168
      %p174 = scmp.eq.s32.totalorder %s15, 0
      %p175 = por %p173, %p174
      %p176 = scmp.ne.s32.totalorder %s165, %s168
      %p177 = scmp.eq.s32.totalorder %s20, 1
      %p178 = por %p176, %p177
      %p179 = scmp.ne.s32.totalorder %s168, %s169
      %p180 = scmp.eq.s32.totalorder %s20, 0
      %p181 = por %p179, %p180
      %p182 = scmp.ne.s32.totalorder %s168, %s169
      %p183 = scmp.eq.s32.totalorder %s21, 1
      %p184 = por %p182, %p183
      %p186 = scmp.ne.s32.totalorder %s169, %s185
      %p187 = scmp.eq.s32.totalorder %s21, 0
      %p188 = por %p186, %p187
      %p189 = scmp.le.s32.totalorder 1, %s15
      %p190 = scmp.lt.s32.totalorder %s15, 3
      %p191 = pnand %p189, %p190
      %p192 = pneg %p191
      // Predicated region
      $region9: #{tpu_custom_call.1} parent=5 // pred_check
        _
      $region10: #{tpu_custom_call.1} parent=5 // pred_check_branch
        %194 = sbr.rel (%p191) target = $region12
      $region11: #{tpu_custom_call.1} parent=5 // pred_region
        %s195 = ssub.s32 %s15, 1
        // Predicated region
        $region13: #{tpu_custom_call.1} parent=11 // pred_check
          %p196 = pneg %p76
        $region14: #{tpu_custom_call.1} parent=11 // pred_check_branch
          %198 = sbr.rel (%p196) target = $region16
        $region15: #{tpu_custom_call.1} parent=11 // pred_region
          _
        $region16: #{tpu_custom_call.1} parent=11 // pred_fallthru
          _
        // Predicated region
        $region17: #{tpu_custom_call.1} parent=11 // pred_check
          %p199 = pneg %p97
        $region18: #{tpu_custom_call.1} parent=11 // pred_check_branch
          %201 = sbr.rel (%p199) target = $region20
        $region19: #{tpu_custom_call.1} parent=11 // pred_region
          _
        $region20: #{tpu_custom_call.1} parent=11 // pred_fallthru
          _
      $region12: #{tpu_custom_call.1} parent=5 // pred_fallthru
        _
      %p202 = scmp.lt.s32.totalorder %s15, 2
      // Predicated region
      $region21: #{tpu_custom_call.1} parent=5 // pred_check
        %p203 = pneg %p202
      $region22: #{tpu_custom_call.1} parent=5 // pred_check_branch
        %205 = sbr.rel (%p203) target = $region24
      $region23: #{tpu_custom_call.1} parent=5 // pred_region
        // Predicated region
        $region25: #{tpu_custom_call.1} parent=23 // pred_check
          %p206 = pneg %p49
        $region26: #{tpu_custom_call.1} parent=23 // pred_check_branch
          %208 = sbr.rel (%p206) target = $region28
        $region27: #{tpu_custom_call.1} parent=23 // pred_region
          %s209 = smul.u32 16, %s23
          %p210 = scmp.lt.s32.totalorder %s22, 1
          %s211 = scalar_select %p210, %s22, 1
          %p212 = scmp.lt.s32.totalorder %s209, 15
          %s213 = scalar_select %p212, %s209, 15
          %s214 = smul.addr %s211, 16
          %s215 = sadd.s32 %s213, %s214
          %s216 = smul.addr %s215, 8
          %s217 = scalar_lea.vmem %s0, %s216
          %s218 = smul.u32 16, %s23
        $region28: #{tpu_custom_call.1} parent=23 // pred_fallthru
          _
      $region24: #{tpu_custom_call.1} parent=5 // pred_fallthru
        _
      %p219 = scmp.le.s32.totalorder 1, %s15
      %p220 = scmp.lt.s32.totalorder %s15, 3
      %p221 = pnand %p219, %p220
      %p222 = pneg %p221
      // Predicated region
      $region29: #{tpu_custom_call.1} parent=5 // pred_check
        _
      $region30: #{tpu_custom_call.1} parent=5 // pred_check_branch
        %224 = sbr.rel (%p221) target = $region32
      $region31: #{tpu_custom_call.1} parent=5 // pred_region
        %s225 = ssub.s32 %s15, 1
        %s226 = smul.u32 16, %s25
        %p227 = scmp.lt.s32.totalorder %s24, 1
        %s228 = scalar_select %p227, %s24, 1
        %p229 = scmp.lt.s32.totalorder %s226, 15
        %s230 = scalar_select %p229, %s226, 15
        %s231 = smul.addr %s228, 16
        %s232 = sadd.s32 %s230, %s231
        %s233 = smul.addr %s232, 8
        %s234 = scalar_lea.vmem %s0, %s233
        %p235 = pneg %p55
        %p236 = pneg %p52
        %p237 = pneg %p76
        %p238 = pneg %p73
        %p239 = pneg %p97
        %p240 = pneg %p94
        %p241 = pneg %p125
        %p242 = pneg %p122
        %s243 = smul.u32 16, %s25
        %p244 = scmp.lt.s32.totalorder %s24, 1
        %s245 = scalar_select %p244, %s24, 1
        %p246 = scmp.lt.s32.totalorder %s243, 15
        %s247 = scalar_select %p246, %s243, 15
        %s248 = smul.addr %s245, 16
        %s249 = sadd.s32 %s247, %s248
        %s250 = smul.addr %s249, 8
        %s251 = scalar_lea.vmem %s3, %s250
        %p252 = pneg %p153
        %p253 = pneg %p150
        %s254 = sand.u32 %s140, 1
        %s255 = scalar_lea.sflag [#allocation3], %s254
        %s256 = sand.u32 %s140, 1
        %s257 = smul.addr %s256, 32
        %s258 = scalar_lea.vmem [#allocation2], %s257
        %p259 = pneg %p181
        %p260 = pneg %p178
        %s261 = smul.u32 16, %s25
        %p262 = scmp.lt.s32.totalorder %s24, 1
        %s263 = scalar_select %p262, %s24, 1
        %p264 = scmp.lt.s32.totalorder %s261, 15
        %s265 = scalar_select %p264, %s261, 15
        %s266 = smul.addr %s263, 16
        %s267 = sadd.s32 %s265, %s266
        %s268 = smul.addr %s267, 8
        %s269 = scalar_lea.vmem %s5, %s268
        %s270 = smul.u32 16, %s25
        %p271 = scmp.lt.s32.totalorder %s24, 1
        %s272 = scalar_select %p271, %s24, 1
        %p273 = scmp.lt.s32.totalorder %s270, 15
        %s274 = scalar_select %p273, %s270, 15
        %s275 = smul.addr %s272, 16
        %s276 = sadd.s32 %s274, %s275
        %s277 = smul.addr %s276, 8
        %s278 = scalar_lea.vmem %s0, %s277
        %s279 = smul.u32 16, %s25
        %s280 = smul.u32 16, %s25
        %p281 = scmp.lt.s32.totalorder %s24, 1
        %s282 = scalar_select %p281, %s24, 1
        %p283 = scmp.lt.s32.totalorder %s280, 15
        %s284 = scalar_select %p283, %s280, 15
        %s285 = smul.addr %s282, 16
        %s286 = sadd.s32 %s284, %s285
        %s287 = smul.addr %s286, 8
        %s288 = scalar_lea.vmem %s3, %s287
        %s289 = smul.u32 16, %s25
        %s290 = smul.u32 16, %s25
        %p291 = scmp.lt.s32.totalorder %s24, 1
        %s292 = scalar_select %p291, %s24, 1
        %p293 = scmp.lt.s32.totalorder %s290, 15
        %s294 = scalar_select %p293, %s290, 15
        %s295 = smul.addr %s292, 16
        %s296 = sadd.s32 %s294, %s295
        %s297 = smul.addr %s296, 8
        %s298 = scalar_lea.vmem %s5, %s297
        %s299 = smul.u32 16, %s25
        %v300 = vld [vmem:[%s278] sm:$0xff]
        %v301 = vld [vmem:[%s278 + $0x8] sm:$0xff]
        %v302 = vld [vmem:[%s278 + $0x10] sm:$0xff]
        %v303 = vld [vmem:[%s278 + $0x18] sm:$0xff]
        %v304 = vld [vmem:[%s278 + $0x20] sm:$0xff]
        %v305 = vld [vmem:[%s278 + $0x28] sm:$0xff]
        %v306 = vld [vmem:[%s278 + $0x30] sm:$0xff]
        %v307 = vld [vmem:[%s278 + $0x38] sm:$0xff]
        %v308 = vld [vmem:[%s278 + $0x40] sm:$0xff]
        %v309 = vld [vmem:[%s278 + $0x48] sm:$0xff]
        %v310 = vld [vmem:[%s278 + $0x50] sm:$0xff]
        %v311 = vld [vmem:[%s278 + $0x58] sm:$0xff]
        %v312 = vld [vmem:[%s278 + $0x60] sm:$0xff]
        %v313 = vld [vmem:[%s278 + $0x68] sm:$0xff]
        %v314 = vld [vmem:[%s278 + $0x70] sm:$0xff]
        %v315 = vld [vmem:[%s278 + $0x78] sm:$0xff]
        %v316 = vld [vmem:[%s1] sm:$0xff]
        %v317 = vld [vmem:[%s1 + $0x8] sm:$0xff]
        %v318 = vld [vmem:[%s1 + $0x10] sm:$0xff]
        %v319 = vld [vmem:[%s1 + $0x18] sm:$0xff]
        %v320 = vld [vmem:[%s2] sm:$0x1]
        %v322 = vlaneseq
        %v323 = vshrl.u32 %v322, 7
        %v324 = vsub.s32 0, %v323
        %v325 = vrot.slane %v320, %v324
        %vm327 = vcmask 261120
        %v329 = vsel %vm327, %v300, 0
        %v332 = vsel %vm327, %v301, 0
        %v335 = vsel %vm327, %v302, 0
        %v338 = vsel %vm327, %v303, 0
        %v341 = vsel %vm327, %v304, 0
        %v344 = vsel %vm327, %v305, 0
        %v347 = vsel %vm327, %v306, 0
        %v350 = vsel %vm327, %v307, 0
        %v353 = vsel %vm327, %v308, 0
        %v356 = vsel %vm327, %v309, 0
        %v359 = vsel %vm327, %v310, 0
        %v362 = vsel %vm327, %v311, 0
        %v365 = vsel %vm327, %v312, 0
        %v368 = vsel %vm327, %v313, 0
        %v371 = vsel %vm327, %v314, 0
        %v374 = vsel %vm327, %v315, 0
        %376 = vmatprep.subr.mxu0 0.0
        %377 = vmatpush1.msra.mxu0 0.0
        %378 = vmatprep.subr.mxu0 0.0
        %379 = vmatpush1.msra.mxu0 0.0
        %380 = vmatprep.subr.mxu0 0.0
        %381 = vmatpush1.msra.mxu0 0.0
        %382 = vmatprep.subr.mxu0 0.0
        %383 = vmatpush1.msra.mxu0 0.0
        %384 = vmatprep.subr.mxu0 0.0
        %385 = vmatpush1.msra.mxu0 0.0
        %386 = vmatprep.subr.mxu0 0.0
        %387 = vmatpush1.msra.mxu0 0.0
        %388 = vmatprep.subr.mxu0 0.0
        %389 = vmatpush1.msra.mxu0 0.0
        %390 = vmatprep.subr.mxu0 0.0
        %391 = vmatpush1.msra.mxu0 0.0
        %392 = vmatprep.subr.mxu0 0.0
        %393 = vmatpush1.msra.mxu0 0.0
        %394 = vmatprep.subr.mxu0 0.0
        %395 = vmatpush1.msra.mxu0 0.0
        %396 = vmatprep.subr.mxu0 0.0
        %397 = vmatpush1.msra.mxu0 0.0
        %398 = vmatprep.subr.mxu0 0.0
        %399 = vmatpush1.msra.mxu0 0.0
        %400 = vmatprep.subr.mxu0 0.0
        %401 = vmatpush1.msra.mxu0 %v319
        %402 = vmatprep.subr.mxu0 0.0
        %403 = vmatpush1.msra.mxu0 %v318
        %404 = vmatprep.subr.mxu0 0.0
        %405 = vmatpush1.msra.mxu0 %v317
        %406 = vmatprep.subr.mxu0 0.0
        %407 = vmatpush1.msra.mxu0 %v316
        %408 = vmatprep.subr.mxu0 0.0
        %409 = vmatpush2.msra.mxu0 0.0
        %410 = vmatprep.subr.mxu0 0.0
        %411 = vmatpush2.msra.mxu0 0.0
        %412 = vmatprep.subr.mxu0 0.0
        %413 = vmatpush2.msra.mxu0 0.0
        %414 = vmatprep.subr.mxu0 0.0
        %415 = vmatpush2.msra.mxu0 0.0
        %416 = vmatprep.subr.mxu0 0.0
        %417 = vmatpush2.msra.mxu0 0.0
        %418 = vmatprep.subr.mxu0 0.0
        %419 = vmatpush2.msra.mxu0 0.0
        %420 = vmatprep.subr.mxu0 0.0
        %421 = vmatpush2.msra.mxu0 0.0
        %422 = vmatprep.subr.mxu0 0.0
        %423 = vmatpush2.msra.mxu0 0.0
        %424 = vmatprep.subr.mxu0 0.0
        %425 = vmatpush2.msra.mxu0 0.0
        %426 = vmatprep.subr.mxu0 0.0
        %427 = vmatpush2.msra.mxu0 0.0
        %428 = vmatprep.subr.mxu0 0.0
        %429 = vmatpush2.msra.mxu0 0.0
        %430 = vmatprep.subr.mxu0 0.0
        %431 = vmatpush2.msra.mxu0 0.0
        %432 = vmatprep.subr.mxu0 0.0
        %433 = vmatpush2.msra.mxu0 0.0
        %434 = vmatprep.subr.mxu0 0.0
        %435 = vmatpush2.msra.mxu0 0.0
        %436 = vmatprep.subr.mxu0 0.0
        %437 = vmatpush2.msra.mxu0 0.0
        %438 = vmatprep.subr.mxu0 0.0
        %439 = vmatpush2.msra.mxu0 0.0
        %440 = vmatprep.mubr.f32.mxu0 0.0
        %441 = vmatmul.mubr.f32.gmra.mxu0 %v329
        %v442 = vpop.f32.mrf.mxu0
        %v443 = vadd.f32 %v325, %v442
        %v444 = vpop.f32.mrf.mxu0
        %445 = vmatprep.mubr.f32.mxu0 0.0
        %446 = vmatmul.mubr.f32.gmra.mxu0 %v332
        %v447 = vpop.f32.mrf.mxu0
        %v448 = vadd.f32 %v325, %v447
        %v449 = vpop.f32.mrf.mxu0
        %450 = vmatprep.mubr.f32.mxu0 0.0
        %451 = vmatmul.mubr.f32.gmra.mxu0 %v335
        %v452 = vpop.f32.mrf.mxu0
        %v453 = vadd.f32 %v325, %v452
        %v454 = vpop.f32.mrf.mxu0
        %455 = vmatprep.mubr.f32.mxu0 0.0
        %456 = vmatmul.mubr.f32.gmra.mxu0 %v338
        %v457 = vpop.f32.mrf.mxu0
        %v458 = vadd.f32 %v325, %v457
        %v459 = vpop.f32.mrf.mxu0
        %460 = vmatprep.mubr.f32.mxu0 0.0
        %461 = vmatmul.mubr.f32.gmra.mxu0 %v341
        %v462 = vpop.f32.mrf.mxu0
        %v463 = vadd.f32 %v325, %v462
        %v464 = vpop.f32.mrf.mxu0
        %465 = vmatprep.mubr.f32.mxu0 0.0
        %466 = vmatmul.mubr.f32.gmra.mxu0 %v344
        %v467 = vpop.f32.mrf.mxu0
        %v468 = vadd.f32 %v325, %v467
        %v469 = vpop.f32.mrf.mxu0
        %470 = vmatprep.mubr.f32.mxu0 0.0
        %471 = vmatmul.mubr.f32.gmra.mxu0 %v347
        %v472 = vpop.f32.mrf.mxu0
        %v473 = vadd.f32 %v325, %v472
        %v474 = vpop.f32.mrf.mxu0
        %475 = vmatprep.mubr.f32.mxu0 0.0
        %476 = vmatmul.mubr.f32.gmra.mxu0 %v350
        %v477 = vpop.f32.mrf.mxu0
        %v478 = vadd.f32 %v325, %v477
        %v479 = vpop.f32.mrf.mxu0
        %480 = vmatprep.mubr.f32.mxu0 0.0
        %481 = vmatmul.mubr.f32.gmra.mxu0 %v353
        %v482 = vpop.f32.mrf.mxu0
        %v483 = vadd.f32 %v325, %v482
        %v484 = vpop.f32.mrf.mxu0
        %485 = vmatprep.mubr.f32.mxu0 0.0
        %486 = vmatmul.mubr.f32.gmra.mxu0 %v356
        %v487 = vpop.f32.mrf.mxu0
        %v488 = vadd.f32 %v325, %v487
        %v489 = vpop.f32.mrf.mxu0
        %490 = vmatprep.mubr.f32.mxu0 0.0
        %491 = vmatmul.mubr.f32.gmra.mxu0 %v359
        %v492 = vpop.f32.mrf.mxu0
        %v493 = vadd.f32 %v325, %v492
        %v494 = vpop.f32.mrf.mxu0
        %495 = vmatprep.mubr.f32.mxu0 0.0
        %496 = vmatmul.mubr.f32.gmra.mxu0 %v362
        %v497 = vpop.f32.mrf.mxu0
        %v498 = vadd.f32 %v325, %v497
        %v499 = vpop.f32.mrf.mxu0
        %500 = vmatprep.mubr.f32.mxu0 0.0
        %501 = vmatmul.mubr.f32.gmra.mxu0 %v365
        %v502 = vpop.f32.mrf.mxu0
        %v503 = vadd.f32 %v325, %v502
        %v504 = vpop.f32.mrf.mxu0
        %505 = vmatprep.mubr.f32.mxu0 0.0
        %506 = vmatmul.mubr.f32.gmra.mxu0 %v368
        %v507 = vpop.f32.mrf.mxu0
        %v508 = vadd.f32 %v325, %v507
        %v509 = vpop.f32.mrf.mxu0
        %510 = vmatprep.mubr.f32.mxu0 0.0
        %511 = vmatmul.mubr.f32.gmra.mxu0 %v371
        %v512 = vpop.f32.mrf.mxu0
        %v513 = vadd.f32 %v325, %v512
        %v514 = vpop.f32.mrf.mxu0
        %515 = vmatprep.mubr.f32.mxu0 0.0
        %516 = vmatmul.mubr.f32.gmra.mxu0 %v374
        %v517 = vpop.f32.mrf.mxu0
        %v518 = vadd.f32 %v325, %v517
        %v519 = vpop.f32.mrf.mxu0
        %520 = vdwg.mxu0
        %521 = vst.msk [vmem:[%s288] sm:$0xff] %vm327, %v443
        %522 = vst.msk [vmem:[%s288 + $0x8] sm:$0xff] %vm327, %v448
        %523 = vst.msk [vmem:[%s288 + $0x10] sm:$0xff] %vm327, %v453
        %524 = vst.msk [vmem:[%s288 + $0x18] sm:$0xff] %vm327, %v458
        %525 = vst.msk [vmem:[%s288 + $0x20] sm:$0xff] %vm327, %v463
        %526 = vst.msk [vmem:[%s288 + $0x28] sm:$0xff] %vm327, %v468
        %527 = vst.msk [vmem:[%s288 + $0x30] sm:$0xff] %vm327, %v473
        %528 = vst.msk [vmem:[%s288 + $0x38] sm:$0xff] %vm327, %v478
        %529 = vst.msk [vmem:[%s288 + $0x40] sm:$0xff] %vm327, %v483
        %530 = vst.msk [vmem:[%s288 + $0x48] sm:$0xff] %vm327, %v488
        %531 = vst.msk [vmem:[%s288 + $0x50] sm:$0xff] %vm327, %v493
        %532 = vst.msk [vmem:[%s288 + $0x58] sm:$0xff] %vm327, %v498
        %533 = vst.msk [vmem:[%s288 + $0x60] sm:$0xff] %vm327, %v503
        %534 = vst.msk [vmem:[%s288 + $0x68] sm:$0xff] %vm327, %v508
        %535 = vst.msk [vmem:[%s288 + $0x70] sm:$0xff] %vm327, %v513
        %536 = vst.msk [vmem:[%s288 + $0x78] sm:$0xff] %vm327, %v518
        %553 = vrot.lane.b32.xlu0 %v443, 96
        %v554 = vpop.permute.xlu0 %553
        %555 = vrot.lane.b32.xlu0 %v448, 96
        %v556 = vpop.permute.xlu0 %555
        %557 = vrot.lane.b32.xlu0 %v453, 96
        %v558 = vpop.permute.xlu0 %557
        %559 = vrot.lane.b32.xlu0 %v458, 96
        %v560 = vpop.permute.xlu0 %559
        %561 = vrot.lane.b32.xlu0 %v463, 96
        %v562 = vpop.permute.xlu0 %561
        %563 = vrot.lane.b32.xlu0 %v468, 96
        %v564 = vpop.permute.xlu0 %563
        %565 = vrot.lane.b32.xlu0 %v473, 96
        %v566 = vpop.permute.xlu0 %565
        %567 = vrot.lane.b32.xlu0 %v478, 96
        %v568 = vpop.permute.xlu0 %567
        %569 = vrot.lane.b32.xlu0 %v483, 96
        %v570 = vpop.permute.xlu0 %569
        %571 = vrot.lane.b32.xlu0 %v488, 96
        %v572 = vpop.permute.xlu0 %571
        %573 = vrot.lane.b32.xlu0 %v493, 96
        %v574 = vpop.permute.xlu0 %573
        %575 = vrot.lane.b32.xlu0 %v498, 96
        %v576 = vpop.permute.xlu0 %575
        %577 = vrot.lane.b32.xlu0 %v503, 96
        %v578 = vpop.permute.xlu0 %577
        %579 = vrot.lane.b32.xlu0 %v508, 96
        %v580 = vpop.permute.xlu0 %579
        %581 = vrot.lane.b32.xlu0 %v513, 96
        %v582 = vpop.permute.xlu0 %581
        %583 = vrot.lane.b32.xlu0 %v518, 96
        %v584 = vpop.permute.xlu0 %583
        %601 = vxpose.xlu0.b32.start [1/16] %v554, 128
        %602 = vxpose.xlu0.b32.cont [2/16] %v556, 128
        %603 = vxpose.xlu0.b32.cont [3/16] %v558, 128
        %604 = vxpose.xlu0.b32.cont [4/16] %v560, 128
        %605 = vxpose.xlu0.b32.cont [5/16] %v562, 128
        %606 = vxpose.xlu0.b32.cont [6/16] %v564, 128
        %607 = vxpose.xlu0.b32.cont [7/16] %v566, 128
        %608 = vxpose.xlu0.b32.cont [8/16] %v568, 128
        %609 = vxpose.xlu0.b32.cont [9/16] %v570, 128
        %610 = vxpose.xlu0.b32.cont [10/16] %v572, 128
        %611 = vxpose.xlu0.b32.cont [11/16] %v574, 128
        %612 = vxpose.xlu0.b32.cont [12/16] %v576, 128
        %613 = vxpose.xlu0.b32.cont [13/16] %v578, 128
        %614 = vxpose.xlu0.b32.cont [14/16] %v580, 128
        %615 = vxpose.xlu0.b32.cont [15/16] %v582, 128
        %616 = vxpose.xlu0.b32.end [16/16] %v584, 128
        %v617 = vpop.trf.xlu0
        %v618 = vpop.trf.xlu0
        %v619 = vpop.trf.xlu0
        %v620 = vpop.trf.xlu0
        %v621 = vpop.trf.xlu0
        %v622 = vpop.trf.xlu0
        %v623 = vpop.trf.xlu0
        %v624 = vpop.trf.xlu0
        %v625 = vpop.trf.xlu0
        %v626 = vpop.trf.xlu0
        %v627 = vpop.trf.xlu0
        %v628 = vpop.trf.xlu0
        %v629 = vpop.trf.xlu0
        %v630 = vpop.trf.xlu0
        %v631 = vpop.trf.xlu0
        %v632 = vpop.trf.xlu0
        %633 = vst [vmem:[%s258] sm:$0xff] %v617
        %634 = vst [vmem:[%s258 + $0x8] sm:$0xff] %v618
        %635 = vst [vmem:[%s258 + $0x10] sm:$0xff] %v619
        %636 = vst [vmem:[%s258 + $0x18] sm:$0xff] %v620
        %637 = vrot.lane.b32.xlu0 %v443, 64
        %v638 = vpop.permute.xlu0 %637
        %639 = vrot.lane.b32.xlu0 %v448, 64
        %v640 = vpop.permute.xlu0 %639
        %641 = vrot.lane.b32.xlu0 %v453, 64
        %v642 = vpop.permute.xlu0 %641
        %643 = vrot.lane.b32.xlu0 %v458, 64
        %v644 = vpop.permute.xlu0 %643
        %645 = vrot.lane.b32.xlu0 %v463, 64
        %v646 = vpop.permute.xlu0 %645
        %647 = vrot.lane.b32.xlu0 %v468, 64
        %v648 = vpop.permute.xlu0 %647
        %649 = vrot.lane.b32.xlu0 %v473, 64
        %v650 = vpop.permute.xlu0 %649
        %651 = vrot.lane.b32.xlu0 %v478, 64
        %v652 = vpop.permute.xlu0 %651
        %653 = vrot.lane.b32.xlu0 %v483, 64
        %v654 = vpop.permute.xlu0 %653
        %655 = vrot.lane.b32.xlu0 %v488, 64
        %v656 = vpop.permute.xlu0 %655
        %657 = vrot.lane.b32.xlu0 %v493, 64
        %v658 = vpop.permute.xlu0 %657
        %659 = vrot.lane.b32.xlu0 %v498, 64
        %v660 = vpop.permute.xlu0 %659
        %661 = vrot.lane.b32.xlu0 %v503, 64
        %v662 = vpop.permute.xlu0 %661
        %663 = vrot.lane.b32.xlu0 %v508, 64
        %v664 = vpop.permute.xlu0 %663
        %665 = vrot.lane.b32.xlu0 %v513, 64
        %v666 = vpop.permute.xlu0 %665
        %667 = vrot.lane.b32.xlu0 %v518, 64
        %v668 = vpop.permute.xlu0 %667
        %685 = vst.msk [vmem:[%s298] sm:$0xff] %vm327, %v638
        %686 = vst.msk [vmem:[%s298 + $0x8] sm:$0xff] %vm327, %v640
        %687 = vst.msk [vmem:[%s298 + $0x10] sm:$0xff] %vm327, %v642
        %688 = vst.msk [vmem:[%s298 + $0x18] sm:$0xff] %vm327, %v644
        %689 = vst.msk [vmem:[%s298 + $0x20] sm:$0xff] %vm327, %v646
        %690 = vst.msk [vmem:[%s298 + $0x28] sm:$0xff] %vm327, %v648
        %691 = vst.msk [vmem:[%s298 + $0x30] sm:$0xff] %vm327, %v650
        %692 = vst.msk [vmem:[%s298 + $0x38] sm:$0xff] %vm327, %v652
        %693 = vst.msk [vmem:[%s298 + $0x40] sm:$0xff] %vm327, %v654
        %694 = vst.msk [vmem:[%s298 + $0x48] sm:$0xff] %vm327, %v656
        %695 = vst.msk [vmem:[%s298 + $0x50] sm:$0xff] %vm327, %v658
        %696 = vst.msk [vmem:[%s298 + $0x58] sm:$0xff] %vm327, %v660
        %697 = vst.msk [vmem:[%s298 + $0x60] sm:$0xff] %vm327, %v662
        %698 = vst.msk [vmem:[%s298 + $0x68] sm:$0xff] %vm327, %v664
        %699 = vst.msk [vmem:[%s298 + $0x70] sm:$0xff] %vm327, %v666
        %700 = vst.msk [vmem:[%s298 + $0x78] sm:$0xff] %vm327, %v668
        %s701 = smul.u32 16, %s25
        %p702 = scmp.lt.s32.totalorder %s24, 1
        %s703 = scalar_select %p702, %s24, 1
        %p704 = scmp.lt.s32.totalorder %s701, 15
        %s705 = scalar_select %p704, %s701, 15
        %s706 = smul.addr %s703, 16
        %s707 = sadd.s32 %s705, %s706
        %s708 = smul.addr %s707, 8
        %s709 = scalar_lea.vmem %s3, %s708
        %s710 = sand.u32 %s140, 1
        %s711 = scalar_lea.sflag [#allocation3], %s710
        %s712 = sand.u32 %s140, 1
        %s713 = smul.addr %s712, 32
        %s714 = scalar_lea.vmem [#allocation2], %s713
        %s715 = smul.u32 16, %s25
        %p716 = scmp.lt.s32.totalorder %s24, 1
        %s717 = scalar_select %p716, %s24, 1
        %p718 = scmp.lt.s32.totalorder %s715, 15
        %s719 = scalar_select %p718, %s715, 15
        %s720 = smul.addr %s717, 16
        %s721 = sadd.s32 %s719, %s720
        %s722 = smul.addr %s721, 8
        %s723 = scalar_lea.vmem %s5, %s722
        // Predicated region
        $region33: #{tpu_custom_call.1} parent=31 // pred_check
          %p724 = pneg %p122
        $region34: #{tpu_custom_call.1} parent=31 // pred_check_branch
          %726 = sbr.rel (%p724) target = $region36
        $region35: #{tpu_custom_call.1} parent=31 // pred_region
          %s727 = smul.u32 16, %s25
        $region36: #{tpu_custom_call.1} parent=31 // pred_fallthru
          _
        // Predicated region
        $region37: #{tpu_custom_call.1} parent=31 // pred_check
          %p728 = pneg %p150
        $region38: #{tpu_custom_call.1} parent=31 // pred_check_branch
          %730 = sbr.rel (%p728) target = $region40
        $region39: #{tpu_custom_call.1} parent=31 // pred_region
          %s732 = ssub.s32 512, 512
          %733 = vsyncadd %s711, %s732
          %s734 = smul.addr %s24, 4
          %s735 = sadd.s32 %s25, %s734
          %s736 = smul.addr %s735, 128
          %s737 = scalar_lea.hbm %s4, %s736
          %s738 = sshll.u32 %s714, 4
          %s739 = int_to_ptr.vmem [resolvable:$true] %s738
          %744 = dma.vmem_to_hbm [thread:$0]  %s739, 512, %s737, %s711, 128, 128, 8
        $region40: #{tpu_custom_call.1} parent=31 // pred_fallthru
          _
        // Predicated region
        $region41: #{tpu_custom_call.1} parent=31 // pred_check
          %p745 = pneg %p178
        $region42: #{tpu_custom_call.1} parent=31 // pred_check_branch
          %747 = sbr.rel (%p745) target = $region44
        $region43: #{tpu_custom_call.1} parent=31 // pred_region
          %s748 = smul.u32 16, %s25
        $region44: #{tpu_custom_call.1} parent=31 // pred_fallthru
          _
      $region32: #{tpu_custom_call.1} parent=5 // pred_fallthru
        _
      %p749 = scmp.le.s32.totalorder 2, %s15
      // Predicated region
      $region45: #{tpu_custom_call.1} parent=5 // pred_check
        %p750 = pneg %p749
      $region46: #{tpu_custom_call.1} parent=5 // pred_check_branch
        %752 = sbr.rel (%p750) target = $region48
      $region47: #{tpu_custom_call.1} parent=5 // pred_region
        %s753 = ssub.s32 %s15, 2
        // Predicated region
        $region49: #{tpu_custom_call.1} parent=47 // pred_check
          %p754 = pneg %p128
        $region50: #{tpu_custom_call.1} parent=47 // pred_check_branch
          %756 = sbr.rel (%p754) target = $region52
        $region51: #{tpu_custom_call.1} parent=47 // pred_region
          %s757 = smul.u32 16, %s27
          %p758 = scmp.lt.s32.totalorder %s26, 1
          %s759 = scalar_select %p758, %s26, 1
          %p760 = scmp.lt.s32.totalorder %s757, 15
          %s761 = scalar_select %p760, %s757, 15
          %s762 = smul.addr %s759, 16
          %s763 = sadd.s32 %s761, %s762
          %s764 = smul.addr %s763, 8
          %s765 = scalar_lea.vmem %s3, %s764
        $region52: #{tpu_custom_call.1} parent=47 // pred_fallthru
          _
        // Predicated region
        $region53: #{tpu_custom_call.1} parent=47 // pred_check
          %p766 = pneg %p156
        $region54: #{tpu_custom_call.1} parent=47 // pred_check_branch
          %768 = sbr.rel (%p766) target = $region56
        $region55: #{tpu_custom_call.1} parent=47 // pred_region
          %s769 = sand.u32 %s141, 1
          %s770 = scalar_lea.sflag [#allocation3], %s769
          %s771 = sand.u32 %s141, 1
          %s772 = smul.addr %s771, 32
          %s773 = scalar_lea.vmem [#allocation2], %s772
          %774 = dma.done %s770, 512
        $region56: #{tpu_custom_call.1} parent=47 // pred_fallthru
          _
        // Predicated region
        $region57: #{tpu_custom_call.1} parent=47 // pred_check
          %p775 = pneg %p184
        $region58: #{tpu_custom_call.1} parent=47 // pred_check_branch
          %777 = sbr.rel (%p775) target = $region60
        $region59: #{tpu_custom_call.1} parent=47 // pred_region
          %s778 = smul.u32 16, %s27
          %p779 = scmp.lt.s32.totalorder %s26, 1
          %s780 = scalar_select %p779, %s26, 1
          %p781 = scmp.lt.s32.totalorder %s778, 15
          %s782 = scalar_select %p781, %s778, 15
          %s783 = smul.addr %s780, 16
          %s784 = sadd.s32 %s782, %s783
          %s785 = smul.addr %s784, 8
          %s786 = scalar_lea.vmem %s5, %s785
        $region60: #{tpu_custom_call.1} parent=47 // pred_fallthru
          _
      $region48: #{tpu_custom_call.1} parent=5 // pred_fallthru
        _
    $region6: #{tpu_custom_call.1} parent=1 // loop_footer
      %s19 = sadd.s32 1, %s15
    $region7: #{tpu_custom_call.1} parent=1 // loop_footer_branch
      %14 = sbr.rel target = $region3
    $region8: #{tpu_custom_call.1} parent=1 // loop_exit
      _
    %787 = vsyncpa [#allocation3], 1
    %s788 = scalar_lea.sflag [#allocation3], 1
    %789 = vsyncpa %s788, 1

</llo_original>
